<compile_context>
chip_gen: v5e
topology: v5e:2x2
jax: 0.10.0
libtpu: 0.0.40
codegen_flags: <defaults>
</compile_context>

<pallas_src>
import functools

import jax
import jax.numpy as jnp
from jax import lax
from jax.experimental import pallas as pl
from jax.experimental.pallas import tpu as pltpu


def _tv_kernel(mask_ref, x_ref, o_ref, *, H, W, n_valid_rows):
    """mask_ref: (2, L) f32 validity masks (row 0: w-diff, row 1: h-diff).
    x_ref:    (TR, L) block — one flattened (H, W) image per row.
    o_ref:    (1, 1) SMEM scalar — this block's partial TV sum."""
    x = x_ref[...].astype(jnp.float32)          # upcast once; all math in f32
    tr = x.shape[0]

    if n_valid_rows % tr != 0:
        # Ragged last block: rows past the input end hold stale VMEM garbage;
        # zero them (zero rows contribute zero TV). Static no-op when divisible.
        base = pl.program_id(0) * tr
        row = lax.broadcasted_iota(jnp.int32, (tr, 1), 0)
        x = jnp.where(base + row < n_valid_rows, x, 0.0)

    contrib = None
    if W > 1:
        # width direction: x[h, w] - x[h, w-1]; (1, L) mask zeroes w == 0.
        dw = x - pltpu.roll(x, shift=1, axis=1)
        contrib = dw * dw * mask_ref[0:1, :]
    if H > 1:
        # height direction: x[h, w] - x[h-1, w]; (1, L) mask zeroes h == 0.
        # (roll by W is lane-aligned — a cheap vreg shuffle — when W % 128 == 0.)
        dh = x - pltpu.roll(x, shift=W, axis=1)
        dh2 = dh * dh * mask_ref[1:2, :]
        contrib = dh2 if contrib is None else contrib + dh2

    if contrib is None:                          # degenerate H == W == 1
        o_ref[0, 0] = jnp.float32(0.0)
    else:
        o_ref[0, 0] = jnp.sum(contrib)


def _vmem_capacity_bytes():
    """Physical VMEM per core, or None if it cannot be queried."""
    try:
        info = pltpu.get_tpu_info()
    except Exception:
        return None
    for name in ("vmem_capacity_bytes", "vmem_bytes", "vmem_capacity"):
        v = getattr(info, name, None)
        if isinstance(v, int) and v > 0:
            return v
    return None


def _block_plan(n_rows, lane_len, itemsize, block_bytes=None):
    """Pick rows-per-block (tr), grid size, and an explicit scoped-VMEM limit.

    Targets per-step INPUT (HBM) bytes so DMA time amortises the ~0.35 us
    per-grid-step overhead; generation-aware via pltpu.get_tpu_info
    (v7x 64 MiB VMEM -> ~4 MiB blocks, v5e/v6e 128 MiB -> ~8 MiB)."""
    vmem_cap = _vmem_capacity_bytes()
    if block_bytes is None:
        if vmem_cap is None:
            block_bytes = 2 << 20                       # conservative fallback
        else:
            block_bytes = max(1 << 20, min(8 << 20, vmem_cap // 16))

    packing = max(1, 4 // max(1, itemsize))             # f32:1  bf16:2  int8:4
    mult = 8 * packing                                   # packed-sublane row multiple
    row_in_bytes = max(1, lane_len * itemsize)

    tr = max(1, block_bytes // row_in_bytes)
    if tr >= n_rows:
        if n_rows >= 2 * mult:
            # One block would cover everything; split so the "parallel" grid
            # axis spans both v7x TensorCores (one extra ~0.35us step elsewhere).
            half = -(-n_rows // 2)
            tr = -(-half // mult) * mult
        else:
            tr = n_rows                                  # block dim == array dim: legal
    else:
        tr = max(mult, (tr // mult) * mult)

    num_blocks = pl.cdiv(n_rows, tr)

    # Scoped-VMEM budget: double-buffered input block + ~5 f32-sized live
    # temporaries (upcast, two roll outputs, diff/contrib) + slack; capped at
    # physical VMEM (64 MiB if unknown).
    in_block = tr * lane_len * itemsize
    f32_block = tr * lane_len * 4
    vmem_limit = 2 * in_block + 5 * f32_block + (2 << 20)
    vmem_limit = max(vmem_limit, 16 << 20)
    vmem_limit = min(vmem_limit, vmem_cap if vmem_cap else 64 << 20)
    return tr, num_blocks, int(vmem_limit)


def tv_loss(x, *, block_bytes=None, min_pallas_bytes=1 << 20):
    """Total variation loss of an NCHW tensor. Returns a float32 scalar."""
    B, C, H, W = x.shape
    N, L = B * C, H * W
    itemsize = x.dtype.itemsize

    # Small-input fast path: below ~1 MiB the kernel is pure launch / per-step
    # overhead; a fused XLA reduction is faster.
    if N * L * itemsize < min_pallas_bytes:
        return tv_loss_ref(x)

    xf = x.reshape(N, L)                                 # free view: lane-dense rows
    tr, num_blocks, vmem_limit = _block_plan(N, L, itemsize, block_bytes)

    # Compile-time validity masks: row 0 zeroes the first column of every image
    # row (w-diff), row 1 zeroes the first image row (h-diff).
    lane = jnp.arange(L, dtype=jnp.int32)
    masks = jnp.stack([(lane % W != 0).astype(jnp.float32),
                       (lane >= W).astype(jnp.float32)], axis=0)      # (2, L)

    kernel = functools.partial(_tv_kernel, H=H, W=W, n_valid_rows=N)
    partials = pl.pallas_call(
        kernel,
        out_shape=jax.ShapeDtypeStruct((num_blocks, 1), jnp.float32),
        grid_spec=pltpu.PrefetchScalarGridSpec(
            num_scalar_prefetch=0,
            grid=(num_blocks,),
            in_specs=[pl.BlockSpec((2, L), lambda i: (0, 0)),         # masks (tiny, resident)
                      pl.BlockSpec((tr, L), lambda i: (i, 0))],       # input row block
            out_specs=pl.BlockSpec((1, 1), lambda i: (i, 0),
                                   memory_space=pltpu.SMEM),
        ),
        compiler_params=pltpu.CompilerParams(
            # per-block partial outputs -> no accumulation race, megacore-safe
            dimension_semantics=("parallel",),
            vmem_limit_bytes=vmem_limit,
        ),
        cost_estimate=pl.CostEstimate(
            flops=7 * N * L,                             # 2 sub + 2 sq + 2 mask-mul + 1 add /elem
            transcendentals=0,
            bytes_accessed=N * L * itemsize + 2 * L * 4 + num_blocks * 4,
        ),
    )(masks, xf)
    # Tiny final reduction over per-block partials in plain JAX.
    return jnp.sum(partials)


def tv_loss_ref(x):
    """Pure-JAX reference matching the PyTorch forward exactly."""
    xf = x.astype(jnp.float32)
    h_tv = jnp.sum((xf[:, :, 1:, :] - xf[:, :, :-1, :]) ** 2)
    w_tv = jnp.sum((xf[:, :, :, 1:] - xf[:, :, :, :-1]) ** 2)
    return h_tv + w_tv


if __name__ == "__main__":
    key = jax.random.PRNGKey(0)
    k1, k2, k3, k4, k5 = jax.random.split(key, 5)

    # Primary case from the module spec (batch=2, channels=4, 16x16);
    # force the Pallas path so the kernel itself is exercised.
    x = jax.random.normal(k1, (2, 4, 16, 16), dtype=jnp.float32)
    out = jax.block_until_ready(tv_loss(x, min_pallas_bytes=0))
    ref = jax.block_until_ready(tv_loss_ref(x))
    assert jnp.allclose(out, ref, rtol=1e-5, atol=1e-4), (out, ref)

    # Same input through the default small-input fast path.
    out_fast = jax.block_until_ready(tv_loss(x))
    assert jnp.allclose(out_fast, ref, rtol=1e-5, atol=1e-4), (out_fast, ref)

    # Multi-block tiled path (grid > 1, "parallel" axis) with a small block budget.
    x2 = jax.random.normal(k2, (2, 8, 32, 128), dtype=jnp.float32)
    out2 = jax.block_until_ready(tv_loss(x2, block_bytes=32 << 10, min_pallas_bytes=0))
    ref2 = jax.block_until_ready(tv_loss_ref(x2))
    assert jnp.allclose(out2, ref2, rtol=1e-4, atol=1e-2), (out2, ref2)

    # Ragged last block (B*C not a multiple of rows-per-block): in-kernel row mask,
    # no jnp.pad / extra HBM copy.
    x3 = jax.random.normal(k3, (2, 5, 16, 16), dtype=jnp.float32)
    out3 = jax.block_until_ready(tv_loss(x3, block_bytes=4 << 10, min_pallas_bytes=0))
    ref3 = jax.block_until_ready(tv_loss_ref(x3))
    assert jnp.allclose(out3, ref3, rtol=1e-5, atol=1e-4), (out3, ref3)

    # bf16 input (upcast-to-f32-before-diff path, matches the reference exactly).
    x4 = jax.random.normal(k4, (2, 4, 16, 16), dtype=jnp.bfloat16)
    out4 = jax.block_until_ready(tv_loss(x4, min_pallas_bytes=0))
    ref4 = jax.block_until_ready(tv_loss_ref(x4))
    assert jnp.allclose(out4, ref4, rtol=1e-4, atol=1e-2), (out4, ref4)

    # Default generation-aware block plan (>= 1 MiB input, auto-split into >= 2 blocks).
    x5 = jax.random.normal(k5, (4, 8, 64, 128), dtype=jnp.float32)
    out5 = jax.block_until_ready(tv_loss(x5))
    ref5 = jax.block_until_ready(tv_loss_ref(x5))
    assert jnp.allclose(out5, ref5, rtol=1e-4, atol=1e-2), (out5, ref5)

    print("KERNEL_OK")
</pallas_src>

<mosaic_0001>
module attributes {stable_mosaic.version = 11 : i64} {
  func.func @_tv_kernel(%arg0: i32, %arg1: memref<2x256xf32, #tpu.memory_space<vmem>>, %arg2: memref<8x256xf32, #tpu.memory_space<vmem>>, %arg3: memref<1x1xf32, #tpu.memory_space<smem>>) attributes {dimension_semantics = [#tpu.dimension_semantics<parallel>], iteration_bounds = array<i64: 1>, scalar_prefetch = 0 : i64, scratch_operands = 0 : i64, tpu.core_type = #tpu.core_type<tc>, window_params = [{pipeline_mode = #tpu.pipeline_mode<synchronous>, transform_indices = @transform_0, window_bounds = array<i64: 2, 256>}, {transform_indices = @transform_1, window_bounds = array<i64: 8, 256>}, {transform_indices = @transform_2, window_bounds = array<i64: 1, 1>}]} {
    %c0 = arith.constant 0 : index
    %c0_0 = arith.constant 0 : index
    %0 = vector.load %arg2[%c0, %c0_0] : memref<8x256xf32, #tpu.memory_space<vmem>>, vector<8x256xf32>
    %c1_i32 = arith.constant 1 : i32
    %1 = tpu.dynamic_rotate %0 by %c1_i32 dim 1 : vector<8x256xf32>, i32 -> vector<8x256xf32>
    %2 = arith.subf %0, %1 : vector<8x256xf32>
    %3 = arith.mulf %2, %2 : vector<8x256xf32>
    %c0_1 = arith.constant 0 : index
    %c0_2 = arith.constant 0 : index
    %4 = vector.load %arg1[%c0_1, %c0_2] : memref<2x256xf32, #tpu.memory_space<vmem>>, vector<1x256xf32>
    %5 = vector.broadcast %4 : vector<1x256xf32> to vector<8x256xf32>
    %6 = arith.mulf %3, %5 : vector<8x256xf32>
    %c16_i32 = arith.constant 16 : i32
    %7 = tpu.dynamic_rotate %0 by %c16_i32 dim 1 : vector<8x256xf32>, i32 -> vector<8x256xf32>
    %8 = arith.subf %0, %7 : vector<8x256xf32>
    %9 = arith.mulf %8, %8 : vector<8x256xf32>
    %c1 = arith.constant 1 : index
    %c0_3 = arith.constant 0 : index
    %10 = vector.load %arg1[%c1, %c0_3] : memref<2x256xf32, #tpu.memory_space<vmem>>, vector<1x256xf32>
    %11 = vector.broadcast %10 : vector<1x256xf32> to vector<8x256xf32>
    %12 = arith.mulf %9, %11 : vector<8x256xf32>
    %13 = arith.addf %6, %12 : vector<8x256xf32>
    %14 = vector.shape_cast %13 : vector<8x256xf32> to vector<1x8x256xf32>
    %cst = arith.constant dense<0.000000e+00> : vector<1xf32>
    %15 = vector.multi_reduction <add>, %14, %cst [1, 2] : vector<1x8x256xf32> to vector<1xf32>
    %16 = vector.shape_cast %15 : vector<1xf32> to vector<1x1x1xf32>
    %17 = vector.extract %16[0, 0, 0] : f32 from vector<1x1x1xf32>
    %c0_4 = arith.constant 0 : index
    %c0_5 = arith.constant 0 : index
    %18 = memref.load %arg3[%c0_4, %c0_5] : memref<1x1xf32, #tpu.memory_space<smem>>
    memref.store %17, %arg3[%c0_4, %c0_5] : memref<1x1xf32, #tpu.memory_space<smem>>
    return
  }
  func.func @transform_0(%arg0: i32) -> (i32, i32) {
    %c0_i32 = arith.constant 0 : i32
    %c0_i32_0 = arith.constant 0 : i32
    %c0_i32_1 = arith.constant 0 : i32
    return %c0_i32, %c0_i32_0 : i32, i32
  }
  func.func @transform_1(%arg0: i32) -> (i32, i32) {
    %c0_i32 = arith.constant 0 : i32
    %c0_i32_0 = arith.constant 0 : i32
    return %arg0, %c0_i32 : i32, i32
  }
  func.func @transform_2(%arg0: i32) -> (i32, i32) {
    %c0_i32 = arith.constant 0 : i32
    %c0_i32_0 = arith.constant 0 : i32
    return %arg0, %c0_i32 : i32, i32
  }
}

</mosaic_0001>

<llo_original>
// kernel: tpu_custom_call.1
$region0: #{tpu_custom_call.1}
  #allocation0 [shape = 'u32[]', space=smem, size = 0x4, offset = 0x4, fixed_abs, tag = 'smem constant byte address 0x4 - core index']
  #allocation1 [shape = 'u32[72,128]{1,0:T(1,128)}', space=vmem, size = 0x9000, scoped, tag = 'internal scratch']
  %s0 = inlined_call_operand.hbm [shape: f32[2,256], index: 0, kind: input, shape index: {}]
  %s1 = inlined_call_operand.hbm [shape: f32[8,256], index: 1, kind: input, shape index: {}]
  %s2 = inlined_call_operand.hbm [shape: f32[1,1], index: 2, kind: output, shape index: {}]
  %s3 = sld [smem:[#allocation0]]
  $region26: #{tpu_custom_call.1} parent=0
    _
  %s5 = ssub.s32 1, %s3
  %s6 = scalar_select 0, %s5, %s3
  $region1: #{tpu_custom_call.1} parent=0
    #allocation2 [shape = 'u8[2048]{0}', space=vmem, size = 0x800, scoped, tag = 'input window, operand 0, single buffered']
    #allocation3 [shape = 's32[1]{0}', space=sflag, size = 0x4, scoped, tag = 'scoped memory for tpu_custom_call.1']
    #allocation4 [shape = 's32[1]{0}', space=sflag, size = 0x4, scoped, tag = 'scoped memory for tpu_custom_call.1']
    #allocation5 [shape = 'u8[8192]{0}', space=vmem, size = 0x2000, scoped, tag = 'input window, operand 1, single buffered']
    #allocation6 [shape = 's32[1]{0}', space=sflag, size = 0x4, scoped, tag = 'scoped memory for tpu_custom_call.1']
    #allocation7 [shape = 'u8[512]{0}', space=smem, size = 0x200, scoped, tag = 'output window, operand 0, single buffered']
    %7 = vsyncpa [#allocation3], 0
    %8 = vsyncpa [#allocation6], 0
    %9 = vsyncpa [#allocation4], 0
    // Predicated region
    $region2: #{tpu_custom_call.1} parent=1 // pred_check
      _
    $region3: #{tpu_custom_call.1} parent=1 // pred_check_branch
      %11 = sbr.rel (0) target = $region5
    $region4: #{tpu_custom_call.1} parent=1 // pred_region
      %13 = vsyncadd [#allocation3], 0
      %s15 = sshll.u32 %s0, 4
      %s16 = int_to_ptr.hbm [resolvable:$true] %s15
      %s17 = sshll.u32 [#allocation2], 4
      %s18 = int_to_ptr.vmem [resolvable:$true] %s17
      %20 = dma.hbm_to_vmem [thread:$0]  %s16, 64, %s18, [#allocation3]
    $region5: #{tpu_custom_call.1} parent=1 // pred_fallthru
      _
    // Predicated region
    $region6: #{tpu_custom_call.1} parent=1 // pred_check
      _
    $region7: #{tpu_custom_call.1} parent=1 // pred_check_branch
      %22 = sbr.rel (0) target = $region9
    $region8: #{tpu_custom_call.1} parent=1 // pred_region
      %24 = vsyncadd [#allocation6], 0
      %s26 = sshll.u32 %s1, 4
      %s27 = int_to_ptr.hbm [resolvable:$true] %s26
      %s28 = sshll.u32 [#allocation5], 4
      %s29 = int_to_ptr.vmem [resolvable:$true] %s28
      %31 = dma.hbm_to_vmem [thread:$0]  %s27, 256, %s29, [#allocation6]
    $region9: #{tpu_custom_call.1} parent=1 // pred_fallthru
      _
    // Predicated region
    $region10: #{tpu_custom_call.1} parent=1 // pred_check
      _
    $region11: #{tpu_custom_call.1} parent=1 // pred_check_branch
      %33 = sbr.rel (0) target = $region13
    $region12: #{tpu_custom_call.1} parent=1 // pred_region
      %35 = dma.done [#allocation3], 64
    $region13: #{tpu_custom_call.1} parent=1 // pred_fallthru
      _
    // Predicated region
    $region14: #{tpu_custom_call.1} parent=1 // pred_check
      _
    $region15: #{tpu_custom_call.1} parent=1 // pred_check_branch
      %37 = sbr.rel (0) target = $region17
    $region16: #{tpu_custom_call.1} parent=1 // pred_region
      %39 = dma.done [#allocation6], 256
    $region17: #{tpu_custom_call.1} parent=1 // pred_fallthru
      _
    %v40 = vld [vmem:[#allocation5] sm:$0xff]
    %v41 = vld [vmem:[#allocation5 + $0x8] sm:$0xff]
    %42 = vrot.lane.b32.xlu0 %v40, 1
    %v43 = vpop.permute.xlu0 %42
    %44 = vrot.lane.b32.xlu0 %v41, 1
    %v45 = vpop.permute.xlu0 %44
    %v46 = vlaneseq
    %v47 = vand.u32 %v46, 127
    %vm48 = vcmp.lt.s32.totalorder %v47, 1
    %v49 = vsel %vm48, %v43, %v45
    %v50 = vsel %vm48, %v45, %v43
    %v51 = vsub.f32 %v40, %v50
    %v52 = vsub.f32 %v41, %v49
    %v53 = vmul.f32 %v51, %v51
    %v54 = vmul.f32 %v52, %v52
    %v55 = vld [vmem:[#allocation2] ss:$2 sm:$0x3]
    %v57 = vperm.slane %v55, 0
    %v58 = vperm.slane %v55, 1
    %v61 = vmul.f32 %v53, %v57
    %v62 = vmul.f32 %v54, %v58
    %63 = vrot.lane.b32.xlu0 %v40, 16
    %v64 = vpop.permute.xlu0 %63
    %65 = vrot.lane.b32.xlu0 %v41, 16
    %v66 = vpop.permute.xlu0 %65
    %vm67 = vcmp.lt.s32.totalorder %v47, 16
    %v68 = vsel %vm67, %v64, %v66
    %v69 = vsel %vm67, %v66, %v64
    %v70 = vsub.f32 %v40, %v69
    %v71 = vsub.f32 %v41, %v68
    %v72 = vmul.f32 %v70, %v70
    %v73 = vmul.f32 %v71, %v71
    %s74 = scalar_lea.vmem [#allocation2], 1
    %v75 = vld [vmem:[%s74] ss:$2 sm:$0x3]
    %v77 = vperm.slane %v75, 0
    %v78 = vperm.slane %v75, 1
    %v81 = vmul.f32 %v72, %v77
    %v82 = vmul.f32 %v73, %v78
    %v83 = vadd.f32 %v61, %v81
    %v84 = vadd.f32 %v62, %v82
    %v85 = vadd.f32 %v83, %v84
    %86 = vadd.xlane.f32.xlu0 %v85
    %v87 = vpop.xlane.xlu0 %86
    %v88 = vrot.slane %v87, 4
    %v89 = vadd.f32 %v87, %v88
    %v90 = vrot.slane %v89, 2
    %v91 = vadd.f32 %v89, %v90
    %v92 = vrot.slane %v91, 1
    %v93 = vadd.f32 %v91, %v92
    %s94 = vtos %v93
    %s95 = scalar_lea.smem [#allocation7], 0
    %96 = sst [smem:[%s95]] %s94
    // Predicated region
    $region18: #{tpu_custom_call.1} parent=1 // pred_check
      _
    $region19: #{tpu_custom_call.1} parent=1 // pred_check_branch
      %98 = sbr.rel (0) target = $region21
    $region20: #{tpu_custom_call.1} parent=1 // pred_region
      %100 = vsyncadd [#allocation4], 0
      %s102 = sshll.u32 %s2, 4
      %s103 = int_to_ptr.hbm [resolvable:$true] %s102
      %105 = dma.smem_to_hbm [#allocation7], 16, %s103, [#allocation4]
    $region21: #{tpu_custom_call.1} parent=1 // pred_fallthru
      _
    // Predicated region
    $region22: #{tpu_custom_call.1} parent=1 // pred_check
      _
    $region23: #{tpu_custom_call.1} parent=1 // pred_check_branch
      %107 = sbr.rel (0) target = $region25
    $region24: #{tpu_custom_call.1} parent=1 // pred_region
      %109 = dma.done [#allocation4], 16
    $region25: #{tpu_custom_call.1} parent=1 // pred_fallthru
      _
    %110 = sfence
    %111 = vsyncpa [#allocation3], 1
    %112 = vsyncpa [#allocation6], 1
    %113 = vsyncpa [#allocation4], 1

</llo_original>
